<compile_context>
chip_gen: v5e
topology: v5e:2x2
jax: 0.10.0
libtpu: 0.0.40
codegen_flags: <defaults>
</compile_context>

<pallas_src>
import functools

import jax
import jax.numpy as jnp
from jax.experimental import pallas as pl
from jax.experimental.pallas import tpu as pltpu


def _round_up(x, m):
    return ((x + m - 1) // m) * m


_VMEM_CAP = None


def _vmem_capacity_bytes():
    """Per-TensorCore VMEM capacity (v5e/v6e: 128 MiB, v7x: 64 MiB)."""
    global _VMEM_CAP
    if _VMEM_CAP is not None:
        return _VMEM_CAP
    cap = None
    try:
        cap = int(getattr(pltpu.get_tpu_info(), "vmem_capacity_bytes", 0)) or None
    except Exception:
        cap = None
    if cap is None:
        try:
            kind = jax.devices()[0].device_kind.lower()
            cap = 64 * 1024 * 1024 if "7" in kind else 128 * 1024 * 1024
        except Exception:
            cap = 64 * 1024 * 1024          # conservative: smallest part
    _VMEM_CAP = cap
    return cap


def _vmem_plan():
    """(vmem_limit_bytes for CompilerParams, per-step tile budget bytes)."""
    cap = _vmem_capacity_bytes()
    if cap <= 80 * 1024 * 1024:             # v7x-class: 64 MiB per TensorCore
        return 36 * 1024 * 1024, 18 * 1024 * 1024
    return 96 * 1024 * 1024, 52 * 1024 * 1024   # v5e / v6e: 128 MiB


def _pick_row_tile(n_rows, n_wo, wo_pad, two_c, n_out,
                   x_bytes, out_bytes, w_bytes, budget):
    """Rows (two-image-row strips) per grid step; each row holds n_wo tokens."""

    def vmem_bytes(t):
        in_blk = t * 2 * n_wo * two_c * x_bytes        # x block
        out_blk = t * n_wo * n_out * out_bytes         # output block
        nrm = 2 * t * wo_pad * two_c * 2               # bf16 scratch (a, b)
        ln_f32 = 2 * t * n_wo * two_c * 4              # f32 LN temporaries
        acc = t * wo_pad * n_out * 4                   # f32 matmul accumulator
        weights = 2 * two_c * n_out * w_bytes + 4 * two_c * 4
        return 2 * (in_blk + out_blk) + nrm + ln_f32 + acc + 2 * weights + (1 << 20)

    tr = min(n_rows, 1024)
    if tr >= 8:
        tr = (tr // 8) * 8
    while tr > 8 and vmem_bytes(tr) > budget:
        tr = max(8, ((tr // 2) // 8) * 8)
    # Keep several grid steps alive: feeds the software pipeline and lets the
    # "parallel" grid axis shard across both v7x TensorCores.
    target_steps = min(n_rows, 4)
    if target_steps > 1 and pl.cdiv(n_rows, tr) < target_steps:
        tr = -(-n_rows // target_steps)                # ceil div
        if tr >= 8:
            tr = (tr // 8) * 8
    return max(tr, 1)


def _patch_merging_kernel(x_ref, ga_ref, ba_ref, gb_ref, bb_ref,
                          wa_ref, wb_ref, o_ref, na_ref, nb_ref,
                          *, n_wo, wo_pad, inv_four_c, eps):
    """LayerNorm(4C) + Linear(4C -> 2C, no bias) over a strip of merged tokens.

    x_ref : (tr, 2, Wo, 2C)  [:, 0] = even image row -> [x0 | x2] channels,
                             [:, 1] = odd  image row -> [x1 | x3] channels
    ga/ba : (1, 2C)          LayerNorm affine, permuted for the [x0|x2] half
    gb/bb : (1, 2C)          LayerNorm affine, permuted for the [x1|x3] half
    wa/wb : (2C, 2C_out)     reduction-weight halves (permuted rows of W^T)
    o_ref : (tr, Wo, 2C_out)
    na/nb : (tr, Wo_pad8, 2C) bf16 scratch for the normalized activations
    """
    tr = o_ref.shape[0]
    two_c = wa_ref.shape[0]
    n_out = wa_ref.shape[1]

    # ---- Phase 1: LayerNorm once over the full (tr, Wo, 2C) slabs. ----
    a = x_ref[:, 0, :, :].astype(jnp.float32)           # (tr, Wo, 2C) [x0|x2]
    b = x_ref[:, 1, :, :].astype(jnp.float32)           # (tr, Wo, 2C) [x1|x3]
    ga = ga_ref[...]
    ba = ba_ref[...]
    gb = gb_ref[...]
    bb = bb_ref[...]

    s = jnp.sum(a, axis=-1, keepdims=True) + jnp.sum(b, axis=-1, keepdims=True)
    sq = (jnp.sum(a * a, axis=-1, keepdims=True)
          + jnp.sum(b * b, axis=-1, keepdims=True))
    mean = s * inv_four_c
    var = jnp.maximum(sq * inv_four_c - mean * mean, 0.0)   # clamp cancellation
    rstd = jax.lax.rsqrt(var + eps)

    na_ref[:, :n_wo, :] = ((a - mean) * rstd * ga + ba).astype(na_ref.dtype)
    nb_ref[:, :n_wo, :] = ((b - mean) * rstd * gb + bb).astype(nb_ref.dtype)
    # Scratch rows [n_wo:wo_pad] stay uninitialized; they only ever feed
    # output rows that are sliced away before the store below.

    # ---- Phase 2: one pair of MXU matmuls with M = tr * Wo_pad8. ----
    la = na_ref[...].reshape(tr * wo_pad, two_c)         # free (wo_pad % 8 == 0)
    lb = nb_ref[...].reshape(tr * wo_pad, two_c)
    acc = jnp.dot(la, wa_ref[...], preferred_element_type=jnp.float32)
    acc = acc + jnp.dot(lb, wb_ref[...], preferred_element_type=jnp.float32)
    out = acc.reshape(tr, wo_pad, n_out)
    o_ref[...] = out[:, :n_wo, :].astype(o_ref.dtype)


def prepare_patch_merging_params(gamma, beta, weight, compute_dtype=jnp.bfloat16):
    """One-time parameter prep (permute / transpose) outside the hot path.

    gamma, beta: (4C,) LayerNorm affine.  weight: (2C, 4C) nn.Linear weight.
    Returns (ga, ba, gb, bb, wa, wb) for patch_merging_forward.
    """
    four_c = gamma.shape[0]
    c = four_c // 4
    two_c = 2 * c
    # Kernel channel order: half "a" = [x0 | x2], half "b" = [x1 | x3]
    # (how a 2x2 window lies contiguously in (B, H, W, C) memory).
    a_perm = jnp.concatenate([jnp.arange(0, c), jnp.arange(2 * c, 3 * c)])
    b_perm = jnp.concatenate([jnp.arange(c, 2 * c), jnp.arange(3 * c, 4 * c)])
    ga = gamma[a_perm].reshape(1, two_c).astype(jnp.float32)
    gb = gamma[b_perm].reshape(1, two_c).astype(jnp.float32)
    ba = beta[a_perm].reshape(1, two_c).astype(jnp.float32)
    bb = beta[b_perm].reshape(1, two_c).astype(jnp.float32)
    wt = weight.T                                  # (4C, 2C_out), transposed once
    wa = wt[a_perm, :].astype(compute_dtype)       # (2C, 2C_out)
    wb = wt[b_perm, :].astype(compute_dtype)
    return ga, ba, gb, bb, wa, wb


@functools.partial(jax.jit, static_argnames=("H", "W"))
def patch_merging_forward(x, H, W, ga, ba, gb, bb, wa, wb):
    """x: (B, H*W, C) -> (B, ceil(H/2)*ceil(W/2), 2C)."""
    B, L, C = x.shape
    assert L == H * W, "input feature has wrong size"
    two_c = 2 * C
    n_out = wa.shape[1]                      # 2C (true width, no padding)

    Hp, Wp = H + (H % 2), W + (W % 2)
    Ho, Wo = Hp // 2, Wp // 2
    wo_pad = _round_up(Wo, 8)                # sublane-aligned matmul grouping

    xg = x.reshape(B, H, W, C)
    if (Hp != H) or (Wp != W):
        # Rare odd-resolution case: one explicit pad copy (same as the module).
        xg = jnp.pad(xg, ((0, 0), (0, Hp - H), (0, Wp - W), (0, 0)))
    # Free view (pure reshape, no HBM copy): row r is one two-image-row strip;
    # the last axis packs two horizontally adjacent pixels -> [x0|x2]/[x1|x3].
    x_view = xg.reshape(B * Ho, 2, Wo, two_c)
    n_rows = B * Ho

    vmem_limit, tile_budget = _vmem_plan()
    tr = _pick_row_tile(n_rows, Wo, wo_pad, two_c, n_out,
                        x_bytes=x.dtype.itemsize, out_bytes=x.dtype.itemsize,
                        w_bytes=wa.dtype.itemsize, budget=tile_budget)
    grid = (pl.cdiv(n_rows, tr),)

    kernel = functools.partial(_patch_merging_kernel, n_wo=Wo, wo_pad=wo_pad,
                               inv_four_c=1.0 / (4 * C), eps=1e-5)

    out = pl.pallas_call(
        kernel,
        out_shape=jax.ShapeDtypeStruct((n_rows, Wo, n_out), x.dtype),
        grid_spec=pltpu.PrefetchScalarGridSpec(
            num_scalar_prefetch=0,
            grid=grid,
            in_specs=[
                pl.BlockSpec((tr, 2, Wo, two_c), lambda i: (i, 0, 0, 0)),
                pl.BlockSpec((1, two_c), lambda i: (0, 0)),      # gamma (a half)
                pl.BlockSpec((1, two_c), lambda i: (0, 0)),      # beta  (a half)
                pl.BlockSpec((1, two_c), lambda i: (0, 0)),      # gamma (b half)
                pl.BlockSpec((1, two_c), lambda i: (0, 0)),      # beta  (b half)
                pl.BlockSpec((two_c, n_out), lambda i: (0, 0)),  # W rows (a)
                pl.BlockSpec((two_c, n_out), lambda i: (0, 0)),  # W rows (b)
            ],
            out_specs=pl.BlockSpec((tr, Wo, n_out), lambda i: (i, 0, 0)),
            scratch_shapes=[
                pltpu.VMEM((tr, wo_pad, two_c), jnp.bfloat16),
                pltpu.VMEM((tr, wo_pad, two_c), jnp.bfloat16),
            ],
        ),
        compiler_params=pltpu.CompilerParams(
            dimension_semantics=("parallel",),
            vmem_limit_bytes=vmem_limit,
        ),
    )(x_view, ga, ba, gb, bb, wa, wb)

    return out.reshape(B, Ho * Wo, n_out)


def _reference_forward(x, H, W, gamma, beta, weight):
    B, L, C = x.shape
    xg = x.reshape(B, H, W, C)
    if (H % 2 == 1) or (W % 2 == 1):
        xg = jnp.pad(xg, ((0, 0), (0, H % 2), (0, W % 2), (0, 0)))
    x0 = xg[:, 0::2, 0::2, :]
    x1 = xg[:, 1::2, 0::2, :]
    x2 = xg[:, 0::2, 1::2, :]
    x3 = xg[:, 1::2, 1::2, :]
    m = jnp.concatenate([x0, x1, x2, x3], axis=-1)
    m = m.reshape(B, -1, 4 * C).astype(jnp.float32)
    mean = jnp.mean(m, axis=-1, keepdims=True)
    var = jnp.mean((m - mean) ** 2, axis=-1, keepdims=True)
    mn = (m - mean) * jax.lax.rsqrt(var + 1e-5) * gamma + beta
    return mn @ weight.T


if __name__ == "__main__":
    # Module config: dim = C = 32 -> LayerNorm(4C=128), Linear(128 -> 64).
    B, H, W, C = 2, 8, 8, 32
    key = jax.random.PRNGKey(0)
    kx, kw, kg, kb = jax.random.split(key, 4)

    x = jax.random.normal(kx, (B, H * W, C), dtype=jnp.float32)
    weight = jax.random.normal(kw, (2 * C, 4 * C), dtype=jnp.float32) * 0.02
    gamma = 1.0 + 0.1 * jax.random.normal(kg, (4 * C,), dtype=jnp.float32)
    beta = 0.05 * jax.random.normal(kb, (4 * C,), dtype=jnp.float32)

    params = prepare_patch_merging_params(gamma, beta, weight)
    out = patch_merging_forward(x, H, W, *params)
    out = jax.block_until_ready(out)

    ref = _reference_forward(x, H, W, gamma, beta, weight)
    assert out.shape == (B, (H // 2) * (W // 2), 2 * C), out.shape
    # bf16 MXU operands (f32 accumulation) vs the pure-f32 reference.
    err = float(jnp.max(jnp.abs(out - ref)))
    assert jnp.allclose(out, ref, atol=2e-2, rtol=2e-2), f"mismatch, max err={err}"

    print("KERNEL_OK")
</pallas_src>

<mosaic_0001>
module attributes {stable_mosaic.version = 11 : i64} {
  func.func @_patch_merging_kernel(%arg0: i32, %arg1: memref<2x2x4x64xf32, #tpu.memory_space<vmem>>, %arg2: memref<1x64xf32, #tpu.memory_space<vmem>>, %arg3: memref<1x64xf32, #tpu.memory_space<vmem>>, %arg4: memref<1x64xf32, #tpu.memory_space<vmem>>, %arg5: memref<1x64xf32, #tpu.memory_space<vmem>>, %arg6: memref<64x64xbf16, #tpu.memory_space<vmem>>, %arg7: memref<64x64xbf16, #tpu.memory_space<vmem>>, %arg8: memref<2x4x64xf32, #tpu.memory_space<vmem>>, %arg9: memref<2x8x64xbf16, #tpu.memory_space<vmem>>, %arg10: memref<2x8x64xbf16, #tpu.memory_space<vmem>>) attributes {dimension_semantics = [#tpu.dimension_semantics<parallel>], iteration_bounds = array<i64: 4>, scalar_prefetch = 0 : i64, scratch_operands = 2 : i64, tpu.core_type = #tpu.core_type<tc>, window_params = [{transform_indices = @transform_0, window_bounds = array<i64: 2, 2, 4, 64>}, {pipeline_mode = #tpu.pipeline_mode<synchronous>, transform_indices = @transform_1, window_bounds = array<i64: 1, 64>}, {pipeline_mode = #tpu.pipeline_mode<synchronous>, transform_indices = @transform_2, window_bounds = array<i64: 1, 64>}, {pipeline_mode = #tpu.pipeline_mode<synchronous>, transform_indices = @transform_3, window_bounds = array<i64: 1, 64>}, {pipeline_mode = #tpu.pipeline_mode<synchronous>, transform_indices = @transform_4, window_bounds = array<i64: 1, 64>}, {pipeline_mode = #tpu.pipeline_mode<synchronous>, transform_indices = @transform_5, window_bounds = array<i64: 64, 64>}, {pipeline_mode = #tpu.pipeline_mode<synchronous>, transform_indices = @transform_6, window_bounds = array<i64: 64, 64>}, {transform_indices = @transform_7, window_bounds = array<i64: 2, 4, 64>}]} {
    %c0 = arith.constant 0 : index
    %c0_0 = arith.constant 0 : index
    %c0_1 = arith.constant 0 : index
    %c0_2 = arith.constant 0 : index
    %0 = vector.load %arg1[%c0, %c0_0, %c0_1, %c0_2] : memref<2x2x4x64xf32, #tpu.memory_space<vmem>>, vector<2x1x4x64xf32>
    %1 = vector.shape_cast %0 : vector<2x1x4x64xf32> to vector<2x4x64xf32>
    %c0_3 = arith.constant 0 : index
    %c1 = arith.constant 1 : index
    %c0_4 = arith.constant 0 : index
    %c0_5 = arith.constant 0 : index
    %2 = vector.load %arg1[%c0_3, %c1, %c0_4, %c0_5] : memref<2x2x4x64xf32, #tpu.memory_space<vmem>>, vector<2x1x4x64xf32>
    %3 = vector.shape_cast %2 : vector<2x1x4x64xf32> to vector<2x4x64xf32>
    %c0_6 = arith.constant 0 : index
    %c0_7 = arith.constant 0 : index
    %4 = vector.load %arg2[%c0_6, %c0_7] : memref<1x64xf32, #tpu.memory_space<vmem>>, vector<1x64xf32>
    %c0_8 = arith.constant 0 : index
    %c0_9 = arith.constant 0 : index
    %5 = vector.load %arg3[%c0_8, %c0_9] : memref<1x64xf32, #tpu.memory_space<vmem>>, vector<1x64xf32>
    %c0_10 = arith.constant 0 : index
    %c0_11 = arith.constant 0 : index
    %6 = vector.load %arg4[%c0_10, %c0_11] : memref<1x64xf32, #tpu.memory_space<vmem>>, vector<1x64xf32>
    %c0_12 = arith.constant 0 : index
    %c0_13 = arith.constant 0 : index
    %7 = vector.load %arg5[%c0_12, %c0_13] : memref<1x64xf32, #tpu.memory_space<vmem>>, vector<1x64xf32>
    %cst = arith.constant dense<0.000000e+00> : vector<2x4xf32>
    %8 = vector.multi_reduction <add>, %1, %cst [2] : vector<2x4x64xf32> to vector<2x4xf32>
    %9 = vector.shape_cast %8 : vector<2x4xf32> to vector<2x4x1xf32>
    %cst_14 = arith.constant dense<0.000000e+00> : vector<2x4xf32>
    %10 = vector.multi_reduction <add>, %3, %cst_14 [2] : vector<2x4x64xf32> to vector<2x4xf32>
    %11 = vector.shape_cast %10 : vector<2x4xf32> to vector<2x4x1xf32>
    %12 = arith.addf %9, %11 : vector<2x4x1xf32>
    %13 = arith.mulf %1, %1 : vector<2x4x64xf32>
    %cst_15 = arith.constant dense<0.000000e+00> : vector<2x4xf32>
    %14 = vector.multi_reduction <add>, %13, %cst_15 [2] : vector<2x4x64xf32> to vector<2x4xf32>
    %15 = vector.shape_cast %14 : vector<2x4xf32> to vector<2x4x1xf32>
    %16 = arith.mulf %3, %3 : vector<2x4x64xf32>
    %cst_16 = arith.constant dense<0.000000e+00> : vector<2x4xf32>
    %17 = vector.multi_reduction <add>, %16, %cst_16 [2] : vector<2x4x64xf32> to vector<2x4xf32>
    %18 = vector.shape_cast %17 : vector<2x4xf32> to vector<2x4x1xf32>
    %19 = arith.addf %15, %18 : vector<2x4x1xf32>
    %cst_17 = arith.constant 7.812500e-03 : f32
    %20 = vector.broadcast %cst_17 : f32 to vector<2x4x1xf32>
    %21 = arith.mulf %12, %20 : vector<2x4x1xf32>
    %cst_18 = arith.constant 7.812500e-03 : f32
    %22 = vector.broadcast %cst_18 : f32 to vector<2x4x1xf32>
    %23 = arith.mulf %19, %22 : vector<2x4x1xf32>
    %24 = arith.mulf %21, %21 : vector<2x4x1xf32>
    %25 = arith.subf %23, %24 : vector<2x4x1xf32>
    %cst_19 = arith.constant 0.000000e+00 : f32
    %26 = vector.broadcast %cst_19 : f32 to vector<2x4x1xf32>
    %27 = arith.maximumf %25, %26 : vector<2x4x1xf32>
    %cst_20 = arith.constant 9.99999974E-6 : f32
    %28 = vector.broadcast %cst_20 : f32 to vector<2x4x1xf32>
    %29 = arith.addf %27, %28 : vector<2x4x1xf32>
    %30 = math.rsqrt %29 : vector<2x4x1xf32>
    %31 = vector.broadcast %21 : vector<2x4x1xf32> to vector<2x4x64xf32>
    %32 = arith.subf %1, %31 : vector<2x4x64xf32>
    %33 = vector.broadcast %30 : vector<2x4x1xf32> to vector<2x4x64xf32>
    %34 = arith.mulf %32, %33 : vector<2x4x64xf32>
    %35 = vector.shape_cast %4 : vector<1x64xf32> to vector<1x1x64xf32>
    %36 = vector.broadcast %35 : vector<1x1x64xf32> to vector<2x4x64xf32>
    %37 = arith.mulf %34, %36 : vector<2x4x64xf32>
    %38 = vector.shape_cast %5 : vector<1x64xf32> to vector<1x1x64xf32>
    %39 = vector.broadcast %38 : vector<1x1x64xf32> to vector<2x4x64xf32>
    %40 = arith.addf %37, %39 : vector<2x4x64xf32>
    %41 = arith.truncf %40 : vector<2x4x64xf32> to vector<2x4x64xbf16>
    %c0_21 = arith.constant 0 : index
    %c0_22 = arith.constant 0 : index
    %c0_23 = arith.constant 0 : index
    %42 = vector.load %arg9[%c0_21, %c0_22, %c0_23] : memref<2x8x64xbf16, #tpu.memory_space<vmem>>, vector<2x4x64xbf16>
    tpu.vector_store %arg9[%c0_21, %c0_22, %c0_23], %41 {strides = array<i32>} : memref<2x8x64xbf16, #tpu.memory_space<vmem>>, vector<2x4x64xbf16>,
    %43 = vector.broadcast %21 : vector<2x4x1xf32> to vector<2x4x64xf32>
    %44 = arith.subf %3, %43 : vector<2x4x64xf32>
    %45 = vector.broadcast %30 : vector<2x4x1xf32> to vector<2x4x64xf32>
    %46 = arith.mulf %44, %45 : vector<2x4x64xf32>
    %47 = vector.shape_cast %6 : vector<1x64xf32> to vector<1x1x64xf32>
    %48 = vector.broadcast %47 : vector<1x1x64xf32> to vector<2x4x64xf32>
    %49 = arith.mulf %46, %48 : vector<2x4x64xf32>
    %50 = vector.shape_cast %7 : vector<1x64xf32> to vector<1x1x64xf32>
    %51 = vector.broadcast %50 : vector<1x1x64xf32> to vector<2x4x64xf32>
    %52 = arith.addf %49, %51 : vector<2x4x64xf32>
    %53 = arith.truncf %52 : vector<2x4x64xf32> to vector<2x4x64xbf16>
    %c0_24 = arith.constant 0 : index
    %c0_25 = arith.constant 0 : index
    %c0_26 = arith.constant 0 : index
    %54 = vector.load %arg10[%c0_24, %c0_25, %c0_26] : memref<2x8x64xbf16, #tpu.memory_space<vmem>>, vector<2x4x64xbf16>
    tpu.vector_store %arg10[%c0_24, %c0_25, %c0_26], %53 {strides = array<i32>} : memref<2x8x64xbf16, #tpu.memory_space<vmem>>, vector<2x4x64xbf16>,
    %c0_27 = arith.constant 0 : index
    %c0_28 = arith.constant 0 : index
    %c0_29 = arith.constant 0 : index
    %55 = vector.load %arg9[%c0_27, %c0_28, %c0_29] : memref<2x8x64xbf16, #tpu.memory_space<vmem>>, vector<2x8x64xbf16>
    %56 = vector.shape_cast %55 : vector<2x8x64xbf16> to vector<16x64xbf16>
    %c0_30 = arith.constant 0 : index
    %c0_31 = arith.constant 0 : index
    %c0_32 = arith.constant 0 : index
    %57 = vector.load %arg10[%c0_30, %c0_31, %c0_32] : memref<2x8x64xbf16, #tpu.memory_space<vmem>>, vector<2x8x64xbf16>
    %58 = vector.shape_cast %57 : vector<2x8x64xbf16> to vector<16x64xbf16>
    %c0_33 = arith.constant 0 : index
    %c0_34 = arith.constant 0 : index
    %59 = vector.load %arg6[%c0_33, %c0_34] : memref<64x64xbf16, #tpu.memory_space<vmem>>, vector<64x64xbf16>
    %cst_35 = arith.constant dense<0.000000e+00> : vector<16x64xf32>
    %60 = tpu.matmul %56, %59, %cst_35 {dimension_numbers = #tpu.dot_dimension_numbers<[1], [0], [0], [1], [0, 0, 1, 1], [], []>} : vector<16x64xbf16>, vector<64x64xbf16>, vector<16x64xf32> -> vector<16x64xf32>
    %c0_36 = arith.constant 0 : index
    %c0_37 = arith.constant 0 : index
    %61 = vector.load %arg7[%c0_36, %c0_37] : memref<64x64xbf16, #tpu.memory_space<vmem>>, vector<64x64xbf16>
    %cst_38 = arith.constant dense<0.000000e+00> : vector<16x64xf32>
    %62 = tpu.matmul %58, %61, %cst_38 {dimension_numbers = #tpu.dot_dimension_numbers<[1], [0], [0], [1], [0, 0, 1, 1], [], []>} : vector<16x64xbf16>, vector<64x64xbf16>, vector<16x64xf32> -> vector<16x64xf32>
    %63 = arith.addf %60, %62 : vector<16x64xf32>
    %64 = vector.shape_cast %63 : vector<16x64xf32> to vector<2x8x64xf32>
    %65 = vector.extract_strided_slice %64 {offsets = [0, 0, 0], sizes = [2, 4, 64], strides = [1, 1, 1]} : vector<2x8x64xf32> to vector<2x4x64xf32>
    %c0_39 = arith.constant 0 : index
    %c0_40 = arith.constant 0 : index
    %c0_41 = arith.constant 0 : index
    %66 = vector.load %arg8[%c0_39, %c0_40, %c0_41] : memref<2x4x64xf32, #tpu.memory_space<vmem>>, vector<2x4x64xf32>
    tpu.vector_store %arg8[%c0_39, %c0_40, %c0_41], %65 {strides = array<i32>} : memref<2x4x64xf32, #tpu.memory_space<vmem>>, vector<2x4x64xf32>,
    return
  }
  func.func @transform_0(%arg0: i32) -> (i32, i32, i32, i32) {
    %c0_i32 = arith.constant 0 : i32
    %c0_i32_0 = arith.constant 0 : i32
    %c0_i32_1 = arith.constant 0 : i32
    %c0_i32_2 = arith.constant 0 : i32
    return %arg0, %c0_i32, %c0_i32_0, %c0_i32_1 : i32, i32, i32, i32
  }
  func.func @transform_1(%arg0: i32) -> (i32, i32) {
    %c0_i32 = arith.constant 0 : i32
    %c0_i32_0 = arith.constant 0 : i32
    %c0_i32_1 = arith.constant 0 : i32
    return %c0_i32, %c0_i32_0 : i32, i32
  }
  func.func @transform_2(%arg0: i32) -> (i32, i32) {
    %c0_i32 = arith.constant 0 : i32
    %c0_i32_0 = arith.constant 0 : i32
    %c0_i32_1 = arith.constant 0 : i32
    return %c0_i32, %c0_i32_0 : i32, i32
  }
  func.func @transform_3(%arg0: i32) -> (i32, i32) {
    %c0_i32 = arith.constant 0 : i32
    %c0_i32_0 = arith.constant 0 : i32
    %c0_i32_1 = arith.constant 0 : i32
    return %c0_i32, %c0_i32_0 : i32, i32
  }
  func.func @transform_4(%arg0: i32) -> (i32, i32) {
    %c0_i32 = arith.constant 0 : i32
    %c0_i32_0 = arith.constant 0 : i32
    %c0_i32_1 = arith.constant 0 : i32
    return %c0_i32, %c0_i32_0 : i32, i32
  }
  func.func @transform_5(%arg0: i32) -> (i32, i32) {
    %c0_i32 = arith.constant 0 : i32
    %c0_i32_0 = arith.constant 0 : i32
    %c0_i32_1 = arith.constant 0 : i32
    return %c0_i32, %c0_i32_0 : i32, i32
  }
  func.func @transform_6(%arg0: i32) -> (i32, i32) {
    %c0_i32 = arith.constant 0 : i32
    %c0_i32_0 = arith.constant 0 : i32
    %c0_i32_1 = arith.constant 0 : i32
    return %c0_i32, %c0_i32_0 : i32, i32
  }
  func.func @transform_7(%arg0: i32) -> (i32, i32, i32) {
    %c0_i32 = arith.constant 0 : i32
    %c0_i32_0 = arith.constant 0 : i32
    %c0_i32_1 = arith.constant 0 : i32
    return %arg0, %c0_i32, %c0_i32_0 : i32, i32, i32
  }
}

</mosaic_0001>

<llo_original>
// kernel: patch_merging_forward.1
$region0: #{patch_merging_forward.1}
  #allocation0 [shape = 'u32[]', space=smem, size = 0x4, offset = 0x4, fixed_abs, tag = 'smem constant byte address 0x4 - core index']
  #allocation1 [shape = 'u32[72,128]{1,0:T(1,128)}', space=vmem, size = 0x9000, scoped, tag = 'internal scratch']
  #allocation2 [shape = 'bf16[2,8,64]{2,1,0:T(8,128)(2,1)}', space=vmem, size = 0x1000, scoped, tag = 'scratch operand']
  #allocation3 [shape = 'bf16[2,8,64]{2,1,0:T(8,128)(2,1)}', space=vmem, size = 0x1000, scoped, tag = 'scratch operand']
  %s0 = inlined_call_operand.vmem [shape: f32[8,2,4,64], index: 0, kind: input, shape index: {}]
  %s1 = inlined_call_operand.vmem [shape: f32[1,64], index: 1, kind: input, shape index: {}]
  %s2 = inlined_call_operand.vmem [shape: f32[1,64], index: 2, kind: input, shape index: {}]
  %s3 = inlined_call_operand.vmem [shape: f32[1,64], index: 3, kind: input, shape index: {}]
  %s4 = inlined_call_operand.vmem [shape: f32[1,64], index: 4, kind: input, shape index: {}]
  %s5 = inlined_call_operand.vmem [shape: bf16[64,64], index: 5, kind: input, shape index: {}]
  %s6 = inlined_call_operand.vmem [shape: bf16[64,64], index: 6, kind: input, shape index: {}]
  %s7 = inlined_call_operand.hbm [shape: f32[8,4,64], index: 7, kind: output, shape index: {}]
  %s8 = sld [smem:[#allocation0]]
  $region61: #{patch_merging_forward.1} parent=0
    _
  %s10 = ssub.s32 1, %s8
  %s11 = scalar_select 0, %s10, %s8
  $region1: #{patch_merging_forward.1} parent=0
    #allocation4 [shape = 'u8[8192]{0}', space=vmem, size = 0x2000, scoped, tag = 'output window, operand 0']
    #allocation5 [shape = 's32[2]{0}', space=sflag, size = 0x8, scoped, tag = 'scoped memory for patch_merging_forward.1']
    %12 = vsyncpa [#allocation5], 0
    %s13 = scalar_lea.sflag [#allocation5], 1
    %14 = vsyncpa %s13, 0
    loop: start=0, step=1, limit=6
    $region2: #{patch_merging_forward.1} parent=1 // loop_pre_header
      _
    $region3: #{patch_merging_forward.1} parent=1 // loop_header
      %s16 = sphi 0, %s20
      %p17 = scmp.ge.s32.totalorder %s16, 6
      %s26 = sphi 0, %s28
      %s29 = sphi 0, %s26
      %s30 = sphi 0, %s29
      %s46 = sphi 0, %s30
      %s50 = sphi 0, %s50
      %s52 = sphi 0, %s50
      %s53 = sphi 0, %s52
      %s67 = sphi 0, %s53
      %s71 = sphi 0, %s71
      %s73 = sphi 0, %s71
      %s74 = sphi 0, %s73
      %s88 = sphi 0, %s74
      %s92 = sphi 0, %s92
      %s94 = sphi 0, %s92
      %s95 = sphi 0, %s94
      %s109 = sphi 0, %s95
      %s113 = sphi 0, %s113
      %s115 = sphi 0, %s113
      %s116 = sphi 0, %s115
      %s130 = sphi 0, %s116
      %s134 = sphi 0, %s134
      %s136 = sphi 0, %s134
      %s137 = sphi 0, %s136
      %s151 = sphi 0, %s137
      %s155 = sphi 0, %s155
      %s157 = sphi 0, %s155
      %s158 = sphi 0, %s157
      %s172 = sphi 0, %s158
      %s178 = sphi 0, %s180
      %s181 = sphi 0, %s178
      %s182 = sphi 0, %s181
      %s198 = sphi 0, %s182
    $region4: #{patch_merging_forward.1} parent=1 // loop_header_branch
      %19 = sbr.rel (%p17) target = $region8
    $region5: #{patch_merging_forward.1} parent=1 // loop_body
      %s21 = ssub.s32 %s16, 1
      %s22 = ssub.s32 %s16, 2
      %s23 = sadd.s32 %s16, 1
      %s24 = ssub.s32 %s16, %s23
      %p25 = scmp.eq.s32.totalorder %s24, 0
      %s27 = sadd.s32 %s26, 1
      %s28 = scalar_select %p25, %s26, %s27
      %p31 = pneg %p25
      %p32 = scmp.eq.s32.totalorder %s16, 3
      %p33 = por %p31, %p32
      %p34 = scmp.ne.s32.totalorder %s26, %s29
      %p35 = scmp.eq.s32.totalorder %s16, 0
      %p36 = por %p34, %p35
      %p37 = scmp.ne.s32.totalorder %s26, %s29
      %p38 = scmp.eq.s32.totalorder %s21, 3
      %p39 = por %p37, %p38
      %p40 = scmp.ne.s32.totalorder %s29, %s30
      %p41 = scmp.eq.s32.totalorder %s21, 0
      %p42 = por %p40, %p41
      %p43 = scmp.ne.s32.totalorder %s29, %s30
      %p44 = scmp.eq.s32.totalorder %s22, 3
      %p45 = por %p43, %p44
      %p47 = scmp.ne.s32.totalorder %s30, %s46
      %p48 = scmp.eq.s32.totalorder %s22, 0
      %p49 = por %p47, %p48
      %s51 = sadd.s32 %s50, 1
      %p54 = scmp.eq.s32.totalorder %s16, 3
      %p55 = scmp.ne.s32.totalorder %s50, %s52
      %p56 = scmp.eq.s32.totalorder %s16, 0
      %p57 = por %p55, %p56
      %p58 = scmp.ne.s32.totalorder %s50, %s52
      %p59 = scmp.eq.s32.totalorder %s21, 3
      %p60 = por %p58, %p59
      %p61 = scmp.ne.s32.totalorder %s52, %s53
      %p62 = scmp.eq.s32.totalorder %s21, 0
      %p63 = por %p61, %p62
      %p64 = scmp.ne.s32.totalorder %s52, %s53
      %p65 = scmp.eq.s32.totalorder %s22, 3
      %p66 = por %p64, %p65
      %p68 = scmp.ne.s32.totalorder %s53, %s67
      %p69 = scmp.eq.s32.totalorder %s22, 0
      %p70 = por %p68, %p69
      %s72 = sadd.s32 %s71, 1
      %p75 = scmp.eq.s32.totalorder %s16, 3
      %p76 = scmp.ne.s32.totalorder %s71, %s73
      %p77 = scmp.eq.s32.totalorder %s16, 0
      %p78 = por %p76, %p77
      %p79 = scmp.ne.s32.totalorder %s71, %s73
      %p80 = scmp.eq.s32.totalorder %s21, 3
      %p81 = por %p79, %p80
      %p82 = scmp.ne.s32.totalorder %s73, %s74
      %p83 = scmp.eq.s32.totalorder %s21, 0
      %p84 = por %p82, %p83
      %p85 = scmp.ne.s32.totalorder %s73, %s74
      %p86 = scmp.eq.s32.totalorder %s22, 3
      %p87 = por %p85, %p86
      %p89 = scmp.ne.s32.totalorder %s74, %s88
      %p90 = scmp.eq.s32.totalorder %s22, 0
      %p91 = por %p89, %p90
      %s93 = sadd.s32 %s92, 1
      %p96 = scmp.eq.s32.totalorder %s16, 3
      %p97 = scmp.ne.s32.totalorder %s92, %s94
      %p98 = scmp.eq.s32.totalorder %s16, 0
      %p99 = por %p97, %p98
      %p100 = scmp.ne.s32.totalorder %s92, %s94
      %p101 = scmp.eq.s32.totalorder %s21, 3
      %p102 = por %p100, %p101
      %p103 = scmp.ne.s32.totalorder %s94, %s95
      %p104 = scmp.eq.s32.totalorder %s21, 0
      %p105 = por %p103, %p104
      %p106 = scmp.ne.s32.totalorder %s94, %s95
      %p107 = scmp.eq.s32.totalorder %s22, 3
      %p108 = por %p106, %p107
      %p110 = scmp.ne.s32.totalorder %s95, %s109
      %p111 = scmp.eq.s32.totalorder %s22, 0
      %p112 = por %p110, %p111
      %s114 = sadd.s32 %s113, 1
      %p117 = scmp.eq.s32.totalorder %s16, 3
      %p118 = scmp.ne.s32.totalorder %s113, %s115
      %p119 = scmp.eq.s32.totalorder %s16, 0
      %p120 = por %p118, %p119
      %p121 = scmp.ne.s32.totalorder %s113, %s115
      %p122 = scmp.eq.s32.totalorder %s21, 3
      %p123 = por %p121, %p122
      %p124 = scmp.ne.s32.totalorder %s115, %s116
      %p125 = scmp.eq.s32.totalorder %s21, 0
      %p126 = por %p124, %p125
      %p127 = scmp.ne.s32.totalorder %s115, %s116
      %p128 = scmp.eq.s32.totalorder %s22, 3
      %p129 = por %p127, %p128
      %p131 = scmp.ne.s32.totalorder %s116, %s130
      %p132 = scmp.eq.s32.totalorder %s22, 0
      %p133 = por %p131, %p132
      %s135 = sadd.s32 %s134, 1
      %p138 = scmp.eq.s32.totalorder %s16, 3
      %p139 = scmp.ne.s32.totalorder %s134, %s136
      %p140 = scmp.eq.s32.totalorder %s16, 0
      %p141 = por %p139, %p140
      %p142 = scmp.ne.s32.totalorder %s134, %s136
      %p143 = scmp.eq.s32.totalorder %s21, 3
      %p144 = por %p142, %p143
      %p145 = scmp.ne.s32.totalorder %s136, %s137
      %p146 = scmp.eq.s32.totalorder %s21, 0
      %p147 = por %p145, %p146
      %p148 = scmp.ne.s32.totalorder %s136, %s137
      %p149 = scmp.eq.s32.totalorder %s22, 3
      %p150 = por %p148, %p149
      %p152 = scmp.ne.s32.totalorder %s137, %s151
      %p153 = scmp.eq.s32.totalorder %s22, 0
      %p154 = por %p152, %p153
      %s156 = sadd.s32 %s155, 1
      %p159 = scmp.eq.s32.totalorder %s16, 3
      %p160 = scmp.ne.s32.totalorder %s155, %s157
      %p161 = scmp.eq.s32.totalorder %s16, 0
      %p162 = por %p160, %p161
      %p163 = scmp.ne.s32.totalorder %s155, %s157
      %p164 = scmp.eq.s32.totalorder %s21, 3
      %p165 = por %p163, %p164
      %p166 = scmp.ne.s32.totalorder %s157, %s158
      %p167 = scmp.eq.s32.totalorder %s21, 0
      %p168 = por %p166, %p167
      %p169 = scmp.ne.s32.totalorder %s157, %s158
      %p170 = scmp.eq.s32.totalorder %s22, 3
      %p171 = por %p169, %p170
      %p173 = scmp.ne.s32.totalorder %s158, %s172
      %p174 = scmp.eq.s32.totalorder %s22, 0
      %p175 = por %p173, %p174
      %s176 = ssub.s32 %s16, %s23
      %p177 = scmp.eq.s32.totalorder %s176, 0
      %s179 = sadd.s32 %s178, 1
      %s180 = scalar_select %p177, %s178, %s179
      %p183 = pneg %p177
      %p184 = scmp.eq.s32.totalorder %s16, 3
      %p185 = por %p183, %p184
      %p186 = scmp.ne.s32.totalorder %s178, %s181
      %p187 = scmp.eq.s32.totalorder %s16, 0
      %p188 = por %p186, %p187
      %p189 = scmp.ne.s32.totalorder %s178, %s181
      %p190 = scmp.eq.s32.totalorder %s21, 3
      %p191 = por %p189, %p190
      %p192 = scmp.ne.s32.totalorder %s181, %s182
      %p193 = scmp.eq.s32.totalorder %s21, 0
      %p194 = por %p192, %p193
      %p195 = scmp.ne.s32.totalorder %s181, %s182
      %p196 = scmp.eq.s32.totalorder %s22, 3
      %p197 = por %p195, %p196
      %p199 = scmp.ne.s32.totalorder %s182, %s198
      %p200 = scmp.eq.s32.totalorder %s22, 0
      %p201 = por %p199, %p200
      %p202 = scmp.le.s32.totalorder 1, %s16
      %p203 = scmp.lt.s32.totalorder %s16, 5
      %p204 = pnand %p202, %p203
      %p205 = pneg %p204
      // Predicated region
      $region9: #{patch_merging_forward.1} parent=5 // pred_check
        _
      $region10: #{patch_merging_forward.1} parent=5 // pred_check_branch
        %207 = sbr.rel (%p204) target = $region12
      $region11: #{patch_merging_forward.1} parent=5 // pred_region
        %s208 = ssub.s32 %s16, 1
        // Predicated region
        $region13: #{patch_merging_forward.1} parent=11 // pred_check
          %p209 = pneg %p63
        $region14: #{patch_merging_forward.1} parent=11 // pred_check_branch
          %211 = sbr.rel (%p209) target = $region16
        $region15: #{patch_merging_forward.1} parent=11 // pred_region
          _
        $region16: #{patch_merging_forward.1} parent=11 // pred_fallthru
          _
        // Predicated region
        $region17: #{patch_merging_forward.1} parent=11 // pred_check
          %p212 = pneg %p84
        $region18: #{patch_merging_forward.1} parent=11 // pred_check_branch
          %214 = sbr.rel (%p212) target = $region20
        $region19: #{patch_merging_forward.1} parent=11 // pred_region
          _
        $region20: #{patch_merging_forward.1} parent=11 // pred_fallthru
          _
        // Predicated region
        $region21: #{patch_merging_forward.1} parent=11 // pred_check
          %p215 = pneg %p105
        $region22: #{patch_merging_forward.1} parent=11 // pred_check_branch
          %217 = sbr.rel (%p215) target = $region24
        $region23: #{patch_merging_forward.1} parent=11 // pred_region
          _
        $region24: #{patch_merging_forward.1} parent=11 // pred_fallthru
          _
        // Predicated region
        $region25: #{patch_merging_forward.1} parent=11 // pred_check
          %p218 = pneg %p126
        $region26: #{patch_merging_forward.1} parent=11 // pred_check_branch
          %220 = sbr.rel (%p218) target = $region28
        $region27: #{patch_merging_forward.1} parent=11 // pred_region
          _
        $region28: #{patch_merging_forward.1} parent=11 // pred_fallthru
          _
        // Predicated region
        $region29: #{patch_merging_forward.1} parent=11 // pred_check
          %p221 = pneg %p147
        $region30: #{patch_merging_forward.1} parent=11 // pred_check_branch
          %223 = sbr.rel (%p221) target = $region32
        $region31: #{patch_merging_forward.1} parent=11 // pred_region
          _
        $region32: #{patch_merging_forward.1} parent=11 // pred_fallthru
          _
        // Predicated region
        $region33: #{patch_merging_forward.1} parent=11 // pred_check
          %p224 = pneg %p168
        $region34: #{patch_merging_forward.1} parent=11 // pred_check_branch
          %226 = sbr.rel (%p224) target = $region36
        $region35: #{patch_merging_forward.1} parent=11 // pred_region
          _
        $region36: #{patch_merging_forward.1} parent=11 // pred_fallthru
          _
      $region12: #{patch_merging_forward.1} parent=5 // pred_fallthru
        _
      %p227 = scmp.lt.s32.totalorder %s16, 4
      // Predicated region
      $region37: #{patch_merging_forward.1} parent=5 // pred_check
        %p228 = pneg %p227
      $region38: #{patch_merging_forward.1} parent=5 // pred_check_branch
        %230 = sbr.rel (%p228) target = $region40
      $region39: #{patch_merging_forward.1} parent=5 // pred_region
        // Predicated region
        $region41: #{patch_merging_forward.1} parent=39 // pred_check
          %p231 = pneg %p36
        $region42: #{patch_merging_forward.1} parent=39 // pred_check_branch
          %233 = sbr.rel (%p231) target = $region44
        $region43: #{patch_merging_forward.1} parent=39 // pred_region
          %s234 = smul.u32 2, %s16
          %p235 = scmp.lt.s32.totalorder %s234, 7
          %s236 = scalar_select %p235, %s234, 7
          %s237 = smul.addr %s236, 2
          %s238 = smul.addr %s237, 4
          %s239 = scalar_lea.vmem %s0, %s238
          %s240 = smul.u32 2, %s16
        $region44: #{patch_merging_forward.1} parent=39 // pred_fallthru
          _
      $region40: #{patch_merging_forward.1} parent=5 // pred_fallthru
        _
      %p241 = scmp.le.s32.totalorder 1, %s16
      %p242 = scmp.lt.s32.totalorder %s16, 5
      %p243 = pnand %p241, %p242
      %p244 = pneg %p243
      // Predicated region
      $region45: #{patch_merging_forward.1} parent=5 // pred_check
        _
      $region46: #{patch_merging_forward.1} parent=5 // pred_check_branch
        %246 = sbr.rel (%p243) target = $region48
      $region47: #{patch_merging_forward.1} parent=5 // pred_region
        %s247 = ssub.s32 %s16, 1
        %s248 = smul.u32 2, %s21
        %p249 = scmp.lt.s32.totalorder %s248, 7
        %s250 = scalar_select %p249, %s248, 7
        %s251 = smul.addr %s250, 2
        %s252 = smul.addr %s251, 4
        %s253 = scalar_lea.vmem %s0, %s252
        %p254 = pneg %p42
        %p255 = pneg %p39
        %p256 = pneg %p63
        %p257 = pneg %p60
        %p258 = pneg %p84
        %p259 = pneg %p81
        %p260 = pneg %p105
        %p261 = pneg %p102
        %p262 = pneg %p126
        %p263 = pneg %p123
        %p264 = pneg %p147
        %p265 = pneg %p144
        %p266 = pneg %p168
        %p267 = pneg %p165
        %p268 = pneg %p194
        %p269 = pneg %p191
        %s270 = sand.u32 %s181, 1
        %s271 = scalar_lea.sflag [#allocation5], %s270
        %s272 = sand.u32 %s181, 1
        %s273 = smul.addr %s272, 8
        %s274 = scalar_lea.vmem [#allocation4], %s273
        %s275 = smul.u32 2, %s21
        %p276 = scmp.lt.s32.totalorder %s275, 7
        %s277 = scalar_select %p276, %s275, 7
        %s278 = smul.addr %s277, 2
        %s279 = smul.addr %s278, 4
        %s280 = scalar_lea.vmem %s0, %s279
        %s281 = smul.u32 2, %s21
        %s282 = smul.u32 2, %s21
        %v284 = vld [vmem:[%s280] sm:$0xf]
        %v285 = vld [vmem:[%s280 + $0x8] sm:$0xf]
        %s286 = scalar_lea.vmem %s280, 4
        %v287 = vld [vmem:[%s286] sm:$0xf]
        %v288 = vld [vmem:[%s286 + $0x8] sm:$0xf]
        %v289 = vld [vmem:[%s1] sm:$0x1]
        %v290 = vld [vmem:[%s2] sm:$0x1]
        %v291 = vld [vmem:[%s3] sm:$0x1]
        %v292 = vld [vmem:[%s4] sm:$0x1]
        %vm293 = vcmask 519168
        %v294 = vsel %vm293, %v284, 0.0
        %295 = vadd.xlane.f32.xlu0 %v294
        %v296 = vpop.xlane.xlu0 %295
        %v297 = vsel %vm293, %v285, 0.0
        %298 = vadd.xlane.f32.xlu0 %v297
        %v299 = vpop.xlane.xlu0 %298
        %v300 = vsel %vm293, %v287, 0.0
        %301 = vadd.xlane.f32.xlu0 %v300
        %v302 = vpop.xlane.xlu0 %301
        %v303 = vsel %vm293, %v288, 0.0
        %304 = vadd.xlane.f32.xlu0 %v303
        %v305 = vpop.xlane.xlu0 %304
        %v306 = vadd.f32 %v296, %v302
        %v307 = vadd.f32 %v299, %v305
        %v308 = vmul.f32 %v284, %v284
        %v309 = vmul.f32 %v285, %v285
        %v310 = vsel %vm293, %v308, 0.0
        %311 = vadd.xlane.f32.xlu0 %v310
        %v312 = vpop.xlane.xlu0 %311
        %v313 = vsel %vm293, %v309, 0.0
        %314 = vadd.xlane.f32.xlu0 %v313
        %v315 = vpop.xlane.xlu0 %314
        %v316 = vmul.f32 %v287, %v287
        %v317 = vmul.f32 %v288, %v288
        %v318 = vsel %vm293, %v316, 0.0
        %319 = vadd.xlane.f32.xlu0 %v318
        %v320 = vpop.xlane.xlu0 %319
        %v321 = vsel %vm293, %v317, 0.0
        %322 = vadd.xlane.f32.xlu0 %v321
        %v323 = vpop.xlane.xlu0 %322
        %v324 = vadd.f32 %v312, %v320
        %v325 = vadd.f32 %v315, %v323
        %v326 = vmul.f32 %v306, 0.0078125
        %v327 = vmul.f32 %v307, 0.0078125
        %v328 = vmul.f32 %v324, 0.0078125
        %v329 = vmul.f32 %v325, 0.0078125
        %v330 = vmul.f32 %v326, %v326
        %v331 = vmul.f32 %v327, %v327
        %v332 = vsub.f32 %v328, %v330
        %v333 = vsub.f32 %v329, %v331
        %v334 = vmax.f32 %v332, 0.0
        %v335 = vmax.f32 %v333, 0.0
        %v336 = vadd.f32 %v334, 1e-05
        %v337 = vadd.f32 %v335, 1e-05
        %v338 = vrsqrt.pop %v336
        %v339 = vmul.f32 %v338, %v336
        %v340 = vmul.f32 %v339, %v338
        %v341 = vmul.f32 0.5, %v340
        %v342 = vsub.f32 1.5, %v341
        %v343 = vmul.f32 %v338, %v342
        %vm344 = vweird.f32 %v336
        %vm345 = vweird.f32 %v338
        %vm346 = vmor %vm344, %vm345
        %v347 = vsel %vm346, %v338, %v343
        %v348 = vrsqrt.pop %v337
        %v349 = vmul.f32 %v348, %v337
        %v350 = vmul.f32 %v349, %v348
        %v351 = vmul.f32 0.5, %v350
        %v352 = vsub.f32 1.5, %v351
        %v353 = vmul.f32 %v348, %v352
        %vm354 = vweird.f32 %v337
        %vm355 = vweird.f32 %v348
        %vm356 = vmor %vm354, %vm355
        %v357 = vsel %vm356, %v348, %v353
        %v358 = vsub.f32 %v284, %v326
        %v359 = vsub.f32 %v285, %v327
        %v360 = vmul.f32 %v358, %v347
        %v361 = vmul.f32 %v359, %v357
        %v363 = vperm.slane %v289, 0
        %v365 = vmul.f32 %v360, %v363
        %v366 = vmul.f32 %v361, %v363
        %v368 = vperm.slane %v290, 0
        %v370 = vadd.f32 %v365, %v368
        %v371 = vadd.f32 %v366, %v368
        %v372 = vpack.c.bf16 %v370, %v370
        %v373 = vpack.c.bf16 %v371, %v371
        %vm374 = vcmask 517120
        %375 = vst.msk [vmem:[#allocation2] sm:$0x3] %vm374, %v372
        %376 = vst.msk [vmem:[#allocation2 + $0x4] sm:$0x3] %vm374, %v373
        %v377 = vsub.f32 %v287, %v326
        %v378 = vsub.f32 %v288, %v327
        %v379 = vmul.f32 %v377, %v347
        %v380 = vmul.f32 %v378, %v357
        %v382 = vperm.slane %v291, 0
        %v384 = vmul.f32 %v379, %v382
        %v385 = vmul.f32 %v380, %v382
        %v387 = vperm.slane %v292, 0
        %v389 = vadd.f32 %v384, %v387
        %v390 = vadd.f32 %v385, %v387
        %v391 = vpack.c.bf16 %v389, %v389
        %v392 = vpack.c.bf16 %v390, %v390
        %393 = vst.msk [vmem:[#allocation3] sm:$0x3] %vm374, %v391
        %394 = vst.msk [vmem:[#allocation3 + $0x4] sm:$0x3] %vm374, %v392
        %v395 = vld [vmem:[#allocation2] sm:$0xf]
        %v396 = vld [vmem:[#allocation2 + $0x4] sm:$0xf]
        %v397 = vld [vmem:[#allocation3] sm:$0xf]
        %v398 = vld [vmem:[#allocation3 + $0x4] sm:$0xf]
        %v399 = vld [vmem:[%s5] sm:$0xf]
        %v400 = vld [vmem:[%s5 + $0x4] sm:$0xf]
        %v401 = vld [vmem:[%s5 + $0x8] sm:$0xf]
        %v402 = vld [vmem:[%s5 + $0xc] sm:$0xf]
        %v403 = vld [vmem:[%s5 + $0x10] sm:$0xf]
        %v404 = vld [vmem:[%s5 + $0x14] sm:$0xf]
        %v405 = vld [vmem:[%s5 + $0x18] sm:$0xf]
        %v406 = vld [vmem:[%s5 + $0x1c] sm:$0xf]
        %v407 = vld [vmem:[%s6] sm:$0xf]
        %v408 = vld [vmem:[%s6 + $0x4] sm:$0xf]
        %v409 = vld [vmem:[%s6 + $0x8] sm:$0xf]
        %v410 = vld [vmem:[%s6 + $0xc] sm:$0xf]
        %v411 = vld [vmem:[%s6 + $0x10] sm:$0xf]
        %v412 = vld [vmem:[%s6 + $0x14] sm:$0xf]
        %v413 = vld [vmem:[%s6 + $0x18] sm:$0xf]
        %v414 = vld [vmem:[%s6 + $0x1c] sm:$0xf]
        %v417 = vunpack.c.l.b16 %v397
        %v418 = vunpack.c.l.b16 %v398
        %v419 = vpack.c.b16 %v418, %v417
        %v428 = vunpack.c.l.b16 %v407
        %v429 = vunpack.c.l.b16 %v408
        %v430 = vunpack.c.l.b16 %v409
        %v431 = vunpack.c.l.b16 %v410
        %v432 = vunpack.c.l.b16 %v411
        %v433 = vunpack.c.l.b16 %v412
        %v434 = vunpack.c.l.b16 %v413
        %v435 = vunpack.c.l.b16 %v414
        %v436 = vpack.c.b16 %v429, %v428
        %v437 = vpack.c.b16 %v431, %v430
        %v438 = vpack.c.b16 %v433, %v432
        %v439 = vpack.c.b16 %v435, %v434
        %vm444 = vcmask 523264
        %v446 = vsel %vm444, %v419, 0
        %448 = vmatpush.bf16.msra.mxu0 0
        %449 = vmatpush.bf16.msra.mxu0 0
        %450 = vmatpush.bf16.msra.mxu0 0
        %451 = vmatpush.bf16.msra.mxu0 0
        %452 = vmatpush.bf16.msra.mxu0 %v439
        %453 = vmatpush.bf16.msra.mxu0 %v438
        %454 = vmatpush.bf16.msra.mxu0 %v437
        %455 = vmatpush.bf16.msra.mxu0 %v436
        %456 = vmatmul.bf16.gmra.mxu0 %v446
        %v457 = vpop.f32.mrf.mxu0
        %v458 = vadd.f32 0.0, %v457
        %v459 = vpop.f32.mrf.mxu0
        %v460 = vadd.f32 0.0, %v459
        %461 = vdwg.mxu0
        %v464 = vunpack.c.l.b16 %v395
        %v465 = vunpack.c.l.b16 %v396
        %v466 = vpack.c.b16 %v465, %v464
        %v475 = vunpack.c.l.b16 %v399
        %v476 = vunpack.c.l.b16 %v400
        %v477 = vunpack.c.l.b16 %v401
        %v478 = vunpack.c.l.b16 %v402
        %v479 = vunpack.c.l.b16 %v403
        %v480 = vunpack.c.l.b16 %v404
        %v481 = vunpack.c.l.b16 %v405
        %v482 = vunpack.c.l.b16 %v406
        %v483 = vpack.c.b16 %v476, %v475
        %v484 = vpack.c.b16 %v478, %v477
        %v485 = vpack.c.b16 %v480, %v479
        %v486 = vpack.c.b16 %v482, %v481
        %v492 = vsel %vm444, %v466, 0
        %494 = vmatpush.bf16.msra.mxu0 0
        %495 = vmatpush.bf16.msra.mxu0 0
        %496 = vmatpush.bf16.msra.mxu0 0
        %497 = vmatpush.bf16.msra.mxu0 0
        %498 = vmatpush.bf16.msra.mxu0 %v486
        %499 = vmatpush.bf16.msra.mxu0 %v485
        %500 = vmatpush.bf16.msra.mxu0 %v484
        %501 = vmatpush.bf16.msra.mxu0 %v483
        %502 = vmatmul.bf16.gmra.mxu0 %v492
        %v503 = vpop.f32.mrf.mxu0
        %v504 = vadd.f32 %v458, %v503
        %v505 = vpop.f32.mrf.mxu0
        %v506 = vadd.f32 %v460, %v505
        %507 = vdwg.mxu0
        %508 = vst.msk [vmem:[%s274] sm:$0xf] %vm293, %v504
        %509 = vst.msk [vmem:[%s274 + $0x4] sm:$0xf] %vm293, %v506
        %s510 = sand.u32 %s181, 1
        %s511 = scalar_lea.sflag [#allocation5], %s510
        %s512 = sand.u32 %s181, 1
        %s513 = smul.addr %s512, 8
        %s514 = scalar_lea.vmem [#allocation4], %s513
        // Predicated region
        $region49: #{patch_merging_forward.1} parent=47 // pred_check
          %p515 = pneg %p191
        $region50: #{patch_merging_forward.1} parent=47 // pred_check_branch
          %517 = sbr.rel (%p515) target = $region52
        $region51: #{patch_merging_forward.1} parent=47 // pred_region
          %s518 = smul.u32 2, %s21
          %520 = vsyncadd %s511, 0
          %s521 = smul.addr %s518, 4
          %s522 = scalar_lea.hbm %s7, %s521
          %s523 = sshll.u32 %s514, 4
          %s524 = int_to_ptr.vmem [resolvable:$true] %s523
          %s525 = sshll.u32 %s522, 4
          %s526 = int_to_ptr.hbm [resolvable:$true] %s525
          %531 = dma.vmem_to_hbm [thread:$0]  %s524, 128, %s526, %s511, 64, 64, 4
        $region52: #{patch_merging_forward.1} parent=47 // pred_fallthru
          _
      $region48: #{patch_merging_forward.1} parent=5 // pred_fallthru
        _
      %p532 = scmp.le.s32.totalorder 2, %s16
      // Predicated region
      $region53: #{patch_merging_forward.1} parent=5 // pred_check
        %p533 = pneg %p532
      $region54: #{patch_merging_forward.1} parent=5 // pred_check_branch
        %535 = sbr.rel (%p533) target = $region56
      $region55: #{patch_merging_forward.1} parent=5 // pred_region
        %s536 = ssub.s32 %s16, 2
        // Predicated region
        $region57: #{patch_merging_forward.1} parent=55 // pred_check
          %p537 = pneg %p197
        $region58: #{patch_merging_forward.1} parent=55 // pred_check_branch
          %539 = sbr.rel (%p537) target = $region60
        $region59: #{patch_merging_forward.1} parent=55 // pred_region
          %s540 = sand.u32 %s182, 1
          %s541 = scalar_lea.sflag [#allocation5], %s540
          %s542 = sand.u32 %s182, 1
          %s543 = smul.addr %s542, 8
          %s544 = scalar_lea.vmem [#allocation4], %s543
          %546 = dma.done %s541, 128
        $region60: #{patch_merging_forward.1} parent=55 // pred_fallthru
          _
      $region56: #{patch_merging_forward.1} parent=5 // pred_fallthru
        _
    $region6: #{patch_merging_forward.1} parent=1 // loop_footer
      %s20 = sadd.s32 1, %s16
    $region7: #{patch_merging_forward.1} parent=1 // loop_footer_branch
      %15 = sbr.rel target = $region3
    $region8: #{patch_merging_forward.1} parent=1 // loop_exit
      _
    %547 = vsyncpa [#allocation5], 1
    %s548 = scalar_lea.sflag [#allocation5], 1
    %549 = vsyncpa %s548, 1

</llo_original>
